<compile_context>
chip_gen: v7x
topology: tpu7x:2x2x1
jax: 0.10.0
libtpu: 0.0.40
codegen_flags: <defaults>
</compile_context>

<pallas_src>
import functools
import math

import numpy as np
import jax
import jax.numpy as jnp
from jax.experimental import pallas as pl
from jax.experimental.pallas import tpu as pltpu


# ---------------------------------------------------------------------------
# Kernel 1: sparsity measure
#   M[q] = max_{sampled k} S[q,k] - (sum over sampled k, with multiplicity)/L_K
# computed from S^T = K @ Q^T kept entirely on-chip (never written to HBM).
# ---------------------------------------------------------------------------
def _prob_qk_kernel(qt_ref, k_ref, cntt_ref, m_ref, *, inv_lk, heads):
    # qt_ref:   (1, H, D, TQ)  bf16
    # k_ref:    (1, H, L_K, D) bf16
    # cntt_ref: (L_K, TQ)      bf16 sample multiplicities (exact small ints)
    # m_ref:    (1, H, 1, TQ)  f32
    cntt = cntt_ref[...]
    sampled = cntt > 0
    for h in range(heads):                       # heads folded into the block
        qt = qt_ref[0, h]                        # (D, TQ)
        k = k_ref[0, h]                          # (L_K, D)

        # S^T = K @ Q^T on the MXU (bf16 in, f32 accumulate); stays in VMEM/vregs.
        st = jax.lax.dot_general(k, qt, (((1,), (0,)), ((), ())),
                                 preferred_element_type=jnp.float32)       # (L_K, TQ)

        # max over sampled keys (sublane reduction -> already lane-dense)
        s_max = jnp.max(jnp.where(sampled, st, -1e30), axis=0, keepdims=True)

        # sampled sum (with multiplicity) via the MXU:
        #   sum_k cnt[q,k]*(Q[q].K[k]) = sum_d Q^T[d,q] * (K^T @ cnt^T)[d,q]
        cnt_kt = jax.lax.dot_general(k, cntt, (((0,), (0,)), ((), ())),
                                     preferred_element_type=jnp.float32)   # (D, TQ)
        s_sum = jnp.sum(qt.astype(jnp.float32) * cnt_kt, axis=0, keepdims=True)

        m_ref[0, h] = s_max - s_sum * inv_lk                               # (1, TQ)


# ---------------------------------------------------------------------------
# Kernel 2: per batch (all heads in-block): recompute the u top-row scores,
# apply ProbMask (col > index[i]), softmax, attn @ V; build the initial context
# cumsum(V) from the resident V tile; overwrite only the u selected rows
# (indices come from SMEM scalar prefetch).
# ---------------------------------------------------------------------------
def _update_context_kernel(idx_smem, qtop_ref, k_ref, v_ref, idxl_ref, ctx_ref,
                           *, scale, u_real, heads):
    b = pl.program_id(0)
    l_q = ctx_ref.shape[2]
    l_k = k_ref.shape[2]
    u_pad = qtop_ref.shape[2]

    # lower-triangular ones (exact in bf16) for the cumsum(V) initial context.
    # TODO(synk): replace the L^2*D MXU tril-matmul with a log-depth pltpu.roll
    # scan (or aliased sparse HBM writes) if it shows up on v5e profiles at long L.
    row = jax.lax.broadcasted_iota(jnp.int32, (l_q, l_k), 0)
    col = jax.lax.broadcasted_iota(jnp.int32, (l_q, l_k), 1)
    tril = (row >= col).astype(k_ref.dtype)

    kcol = jax.lax.broadcasted_iota(jnp.int32, (l_k, u_pad), 0)

    for h in range(heads):
        qh = qtop_ref[0, h]                      # (u_pad, D) bf16
        kh = k_ref[0, h]                         # (L_K, D)   bf16
        vh = v_ref[0, h]                         # (L_K, D)   bf16
        idx_lane = idxl_ref[0, h]                # (1, u_pad) i32  (lane-dense)

        # transposed top-row scores S^T = K @ Qtop^T (f32 accumulate), scaled.
        st = jax.lax.dot_general(kh, qh, (((1,), (1,)), ((), ())),
                                 preferred_element_type=jnp.float32) * scale  # (L_K, u_pad)

        # ProbMask: mask key column kcol when kcol > index[i]; transposed layout
        # lets the (1, u_pad) index vector broadcast with no in-kernel transpose.
        masked = jnp.where(kcol > idx_lane, -1e30, st)

        # softmax over keys (sublane reduction)
        mx = jnp.max(masked, axis=0, keepdims=True)
        p = jnp.exp(masked - mx)
        attn_t = p / jnp.sum(p, axis=0, keepdims=True)                        # (L_K, u_pad)

        av = jax.lax.dot_general(attn_t.astype(vh.dtype), vh,
                                 (((0,), (0,)), ((), ())),
                                 preferred_element_type=jnp.float32)          # (u_pad, D)

        # initial context = cumsum(V) built from the already-resident V tile.
        ctx_h = jax.lax.dot_general(tril, vh, (((1,), (0,)), ((), ())),
                                    preferred_element_type=jnp.float32)       # (L_Q, D)
        ctx_ref[0, h] = ctx_h.astype(ctx_ref.dtype)

        # overwrite only the u selected rows (dynamic row stores, SMEM indices).
        base = (b * heads + h) * u_pad
        for i in range(u_real):                  # static unroll; i is a Python int
            r = idx_smem[base + i]
            ctx_ref[0, h, pl.ds(r, 1), :] = av[i:i + 1, :].astype(ctx_ref.dtype)


# ---------------------------------------------------------------------------
# Helpers
# ---------------------------------------------------------------------------
def _vmem_budget():
    """Generation-aware VMEM budget (~85% of per-core capacity)."""
    cap = 64 * 1024 * 1024
    try:
        info = pltpu.get_tpu_info()
        cap = int(getattr(info, "vmem_capacity_bytes", cap))
    except Exception:
        pass
    return int(cap * 0.85)


def _choose_q_tile(l_q, heads, l_k, d, budget):
    """Largest L_Q tile (full length or a 128-multiple divisor) whose kernel-1
    working set fits the VMEM budget."""
    def est(tq):
        inputs = 2 * (heads * d * tq * 2 + heads * l_k * d * 2 + l_k * tq * 2)  # bf16, 2x buffered
        out = 2 * heads * tq * 4
        temps = 2 * l_k * tq * 4 + 2 * d * tq * 4   # st + masked copy, cnt_kt + product (one head live)
        return inputs + out + temps

    if est(l_q) <= budget:
        return l_q
    t = (min(l_q, 2048) // 128) * 128
    while t >= 128:
        if l_q % t == 0 and est(t) <= budget:
            return t
        t -= 128
    return l_q   # no fitting 128-multiple divisor: fall back to full length


# ---------------------------------------------------------------------------
# Public wrapper (PyTorch forward layout [B, L, H, D])
# ---------------------------------------------------------------------------
def prob_attention(queries, keys, values, index_sample, *, factor=5, scale=None):
    """index_sample: [L_Q, U_part] int32 sampled key indices (analogue of
    torch.randint(L_K, (L_Q, sample_k))). Returns (context [B,H,L_Q,D] f32, None)."""
    B, L_Q, H, D = queries.shape
    _, L_K, _, _ = keys.shape
    assert L_Q == L_K, "mask_flag=True requires L_Q == L_V"

    cdt = jnp.bfloat16
    qt = jnp.transpose(queries, (0, 2, 3, 1)).astype(cdt)    # [B,H,D,L_Q]
    k = jnp.transpose(keys, (0, 2, 1, 3)).astype(cdt)        # [B,H,L_K,D]
    v = jnp.transpose(values, (0, 2, 1, 3)).astype(cdt)      # [B,H,L_V,D]

    U_part = min(int(factor * math.ceil(math.log(L_K))), L_K)
    u = min(int(factor * math.ceil(math.log(L_Q))), L_Q)
    assert index_sample.shape == (L_Q, U_part)
    u_pad = max(8, ((u + 7) // 8) * 8)          # sublane-aligned top-k row count

    # transposed sample-multiplicity matrix cnt^T[k, q] (counts repeats like torch)
    cnt_t = jnp.zeros((L_K, L_Q), jnp.float32).at[
        index_sample, jnp.arange(L_Q)[:, None]].add(1.0).astype(cdt)

    budget = _vmem_budget()
    TQ = _choose_q_tile(L_Q, H, L_K, D, budget)
    nq = L_Q // TQ

    # ---- kernel 1: sparsity measure M (full score matrix never hits HBM) ----
    m_meas = pl.pallas_call(
        functools.partial(_prob_qk_kernel, inv_lk=1.0 / float(L_K), heads=H),
        out_shape=jax.ShapeDtypeStruct((B, H, 1, L_Q), jnp.float32),
        grid=(nq, B),          # iq outermost -> cnt^T tile stays resident over B
        in_specs=[pl.BlockSpec((1, H, D, TQ), lambda iq, b: (b, 0, 0, iq)),
                  pl.BlockSpec((1, H, L_K, D), lambda iq, b: (b, 0, 0, 0)),
                  pl.BlockSpec((L_K, TQ), lambda iq, b: (0, iq))],
        out_specs=pl.BlockSpec((1, H, 1, TQ), lambda iq, b: (b, 0, 0, iq)),
        compiler_params=pltpu.CompilerParams(
            dimension_semantics=("parallel", "parallel"),
            vmem_limit_bytes=budget),
    )(qt, k, cnt_t)

    M = m_meas[:, :, 0, :]                                   # [B,H,L_Q] f32
    _, m_top = jax.lax.top_k(M, u)                           # [B,H,u]
    m_top = m_top.astype(jnp.int32)
    if u_pad > u:                                            # pad rows never scattered
        m_top_p = jnp.concatenate(
            [m_top, jnp.zeros((B, H, u_pad - u), jnp.int32)], axis=-1)
    else:
        m_top_p = m_top

    # gather the u_pad selected query rows directly from the [B,L,H,D] input (tiny)
    idx_q = jnp.transpose(m_top_p, (0, 2, 1))[..., None]          # [B,u_pad,H,1]
    q_top = jnp.take_along_axis(queries, idx_q, axis=1)           # [B,u_pad,H,D]
    q_top = jnp.transpose(q_top, (0, 2, 1, 3)).astype(cdt)        # [B,H,u_pad,D]

    idx_flat = m_top_p.reshape(-1)                                # SMEM scalar prefetch
    idx_lane = m_top_p[:, :, None, :]                             # [B,H,1,u_pad] lane-dense

    sc = float(scale) if scale is not None else 1.0 / math.sqrt(D)

    # ---- kernel 2: mask + softmax + attn@V + in-kernel cumsum(V) + sparse rows ----
    context = pl.pallas_call(
        functools.partial(_update_context_kernel, scale=sc, u_real=u, heads=H),
        out_shape=jax.ShapeDtypeStruct((B, H, L_Q, D), jnp.float32),
        grid_spec=pltpu.PrefetchScalarGridSpec(
            num_scalar_prefetch=1,
            grid=(B,),
            in_specs=[pl.BlockSpec((1, H, u_pad, D), lambda b, idx: (b, 0, 0, 0)),
                      pl.BlockSpec((1, H, L_K, D), lambda b, idx: (b, 0, 0, 0)),
                      pl.BlockSpec((1, H, L_K, D), lambda b, idx: (b, 0, 0, 0)),
                      pl.BlockSpec((1, H, 1, u_pad), lambda b, idx: (b, 0, 0, 0))],
            out_specs=pl.BlockSpec((1, H, L_Q, D), lambda b, idx: (b, 0, 0, 0))),
        compiler_params=pltpu.CompilerParams(
            dimension_semantics=("parallel",),
            vmem_limit_bytes=budget),
    )(idx_flat, q_top, k, v, idx_lane)

    # output_attention=False -> attn is None
    return context, None


# ---------------------------------------------------------------------------
# Pure-JAX reference (same bf16 compute path) for the correctness check
# ---------------------------------------------------------------------------
def prob_attention_ref(queries, keys, values, index_sample, *, factor=5, scale=None):
    B, L_Q, H, D = queries.shape
    _, L_K, _, _ = keys.shape
    q = jnp.transpose(queries, (0, 2, 1, 3)).astype(jnp.bfloat16)
    k = jnp.transpose(keys, (0, 2, 1, 3)).astype(jnp.bfloat16)
    v = jnp.transpose(values, (0, 2, 1, 3)).astype(jnp.bfloat16)
    u = min(int(factor * math.ceil(math.log(L_Q))), L_Q)

    S = jnp.einsum('bhqd,bhkd->bhqk', q, k, preferred_element_type=jnp.float32)
    QKs = jnp.take_along_axis(S, index_sample[None, None, :, :], axis=3)
    M = QKs.max(-1) - QKs.sum(-1) / L_K
    _, m_top = jax.lax.top_k(M, u)
    scores = jnp.take_along_axis(S, m_top[..., None], axis=2)
    sc = scale if scale is not None else 1.0 / math.sqrt(D)
    scores = scores * sc
    kk = jnp.arange(L_K)[None, None, None, :]
    scores = jnp.where(kk > m_top[..., None], -jnp.inf, scores)
    attn = jax.nn.softmax(scores, axis=-1)
    ctx = jnp.cumsum(v.astype(jnp.float32), axis=2)
    upd = jnp.einsum('bhuk,bhkd->bhud', attn.astype(jnp.bfloat16), v,
                     preferred_element_type=jnp.float32)
    ctx = ctx.at[jnp.arange(B)[:, None, None],
                 jnp.arange(H)[None, :, None], m_top].set(upd)
    return ctx


if __name__ == "__main__":
    key = jax.random.PRNGKey(0)
    kq, kk_, kv, ks = jax.random.split(key, 4)

    B, L, H, D = 2, 16, 4, 32          # L_Q == L_K == 16 (mask_flag=True path)
    queries = jax.random.normal(kq, (B, L, H, D), jnp.float32)
    keys = jax.random.normal(kk_, (B, L, H, D), jnp.float32)
    values = jax.random.normal(kv, (B, L, H, D), jnp.float32)

    factor = 5
    U_part = min(int(factor * math.ceil(math.log(L))), L)
    index_sample = jax.random.randint(ks, (L, U_part), 0, L, dtype=jnp.int32)

    ctx, attn = prob_attention(queries, keys, values, index_sample, factor=factor)
    ctx = jax.block_until_ready(ctx)
    assert attn is None
    assert ctx.shape == (B, H, L, D)

    ref = prob_attention_ref(queries, keys, values, index_sample, factor=factor)
    ref = jax.block_until_ready(ref)
    if not np.allclose(np.asarray(ctx), np.asarray(ref), rtol=5e-3, atol=5e-3):
        err = float(np.max(np.abs(np.asarray(ctx) - np.asarray(ref))))
        raise AssertionError(
            f"Pallas ProbAttention does not match JAX reference (max |err|={err})")

    print("KERNEL_OK")
</pallas_src>

<mosaic_0001>
module attributes {stable_mosaic.version = 11 : i64} {
  func.func @_prob_qk_kernel(%arg0: i32, %arg1: i32, %arg2: memref<1x4x32x16xbf16, #tpu.memory_space<vmem>>, %arg3: memref<1x4x16x32xbf16, #tpu.memory_space<vmem>>, %arg4: memref<16x16xbf16, #tpu.memory_space<vmem>>, %arg5: memref<1x4x1x16xf32, #tpu.memory_space<vmem>>) attributes {dimension_semantics = [#tpu.dimension_semantics<parallel>, #tpu.dimension_semantics<parallel>], iteration_bounds = array<i64: 1, 2>, scalar_prefetch = 0 : i64, scratch_operands = 0 : i64, tpu.core_type = #tpu.core_type<tc>, window_params = [{transform_indices = @transform_0, window_bounds = array<i64: 1, 4, 32, 16>}, {transform_indices = @transform_1, window_bounds = array<i64: 1, 4, 16, 32>}, {transform_indices = @transform_2, window_bounds = array<i64: 16, 16>}, {transform_indices = @transform_3, window_bounds = array<i64: 1, 4, 1, 16>}]} {
    %c0 = arith.constant 0 : index
    %c0_0 = arith.constant 0 : index
    %0 = vector.load %arg4[%c0, %c0_0] : memref<16x16xbf16, #tpu.memory_space<vmem>>, vector<16x16xbf16>
    %cst = arith.constant 0.000000e+00 : bf16
    %1 = vector.broadcast %cst : bf16 to vector<16x16xbf16>
    %2 = arith.cmpf ogt, %0, %1 : vector<16x16xbf16>
    %c0_1 = arith.constant 0 : index
    %c0_2 = arith.constant 0 : index
    %c0_3 = arith.constant 0 : index
    %c0_4 = arith.constant 0 : index
    %3 = vector.load %arg2[%c0_1, %c0_2, %c0_3, %c0_4] : memref<1x4x32x16xbf16, #tpu.memory_space<vmem>>, vector<1x1x32x16xbf16>
    %4 = vector.shape_cast %3 : vector<1x1x32x16xbf16> to vector<32x16xbf16>
    %c0_5 = arith.constant 0 : index
    %c0_6 = arith.constant 0 : index
    %c0_7 = arith.constant 0 : index
    %c0_8 = arith.constant 0 : index
    %5 = vector.load %arg3[%c0_5, %c0_6, %c0_7, %c0_8] : memref<1x4x16x32xbf16, #tpu.memory_space<vmem>>, vector<1x1x16x32xbf16>
    %6 = vector.shape_cast %5 : vector<1x1x16x32xbf16> to vector<16x32xbf16>
    %cst_9 = arith.constant dense<0.000000e+00> : vector<16x16xf32>
    %7 = tpu.matmul %6, %4, %cst_9 {dimension_numbers = #tpu.dot_dimension_numbers<[1], [0], [0], [1], [0, 0, 1, 1], [], []>} : vector<16x32xbf16>, vector<32x16xbf16>, vector<16x16xf32> -> vector<16x16xf32>
    %cst_10 = arith.constant -1.000000e+30 : f32
    %8 = vector.broadcast %cst_10 : f32 to vector<16x16xf32>
    %9 = arith.select %2, %7, %8 : vector<16x16xi1>, vector<16x16xf32>
    %cst_11 = arith.constant dense<0xFF800000> : vector<16xf32>
    %10 = vector.multi_reduction <maximumf>, %9, %cst_11 [0] : vector<16x16xf32> to vector<16xf32>
    %11 = vector.shape_cast %10 : vector<16xf32> to vector<1x16xf32>
    %cst_12 = arith.constant dense<0.000000e+00> : vector<32x16xf32>
    %12 = tpu.matmul %6, %0, %cst_12 {dimension_numbers = #tpu.dot_dimension_numbers<[0], [0], [1], [1], [0, 1, 1, 1], [], []>} : vector<16x32xbf16>, vector<16x16xbf16>, vector<32x16xf32> -> vector<32x16xf32>
    %13 = arith.extf %4 : vector<32x16xbf16> to vector<32x16xf32>
    %14 = arith.mulf %13, %12 : vector<32x16xf32>
    %cst_13 = arith.constant dense<0.000000e+00> : vector<16xf32>
    %15 = vector.multi_reduction <add>, %14, %cst_13 [0] : vector<32x16xf32> to vector<16xf32>
    %16 = vector.shape_cast %15 : vector<16xf32> to vector<1x16xf32>
    %cst_14 = arith.constant 6.250000e-02 : f32
    %17 = vector.broadcast %cst_14 : f32 to vector<1x16xf32>
    %18 = arith.mulf %16, %17 : vector<1x16xf32>
    %19 = arith.subf %11, %18 : vector<1x16xf32>
    %c0_15 = arith.constant 0 : index
    %c0_16 = arith.constant 0 : index
    %c0_17 = arith.constant 0 : index
    %c0_18 = arith.constant 0 : index
    %20 = vector.load %arg5[%c0_15, %c0_16, %c0_17, %c0_18] : memref<1x4x1x16xf32, #tpu.memory_space<vmem>>, vector<1x1x1x16xf32>
    %21 = vector.shape_cast %20 : vector<1x1x1x16xf32> to vector<1x16xf32>
    %22 = vector.shape_cast %19 : vector<1x16xf32> to vector<1x1x1x16xf32>
    tpu.vector_store %arg5[%c0_15, %c0_16, %c0_17, %c0_18], %22 {strides = array<i32>} : memref<1x4x1x16xf32, #tpu.memory_space<vmem>>, vector<1x1x1x16xf32>,
    %c0_19 = arith.constant 0 : index
    %c1 = arith.constant 1 : index
    %c0_20 = arith.constant 0 : index
    %c0_21 = arith.constant 0 : index
    %23 = vector.load %arg2[%c0_19, %c1, %c0_20, %c0_21] : memref<1x4x32x16xbf16, #tpu.memory_space<vmem>>, vector<1x1x32x16xbf16>
    %24 = vector.shape_cast %23 : vector<1x1x32x16xbf16> to vector<32x16xbf16>
    %c0_22 = arith.constant 0 : index
    %c1_23 = arith.constant 1 : index
    %c0_24 = arith.constant 0 : index
    %c0_25 = arith.constant 0 : index
    %25 = vector.load %arg3[%c0_22, %c1_23, %c0_24, %c0_25] : memref<1x4x16x32xbf16, #tpu.memory_space<vmem>>, vector<1x1x16x32xbf16>
    %26 = vector.shape_cast %25 : vector<1x1x16x32xbf16> to vector<16x32xbf16>
    %cst_26 = arith.constant dense<0.000000e+00> : vector<16x16xf32>
    %27 = tpu.matmul %26, %24, %cst_26 {dimension_numbers = #tpu.dot_dimension_numbers<[1], [0], [0], [1], [0, 0, 1, 1], [], []>} : vector<16x32xbf16>, vector<32x16xbf16>, vector<16x16xf32> -> vector<16x16xf32>
    %cst_27 = arith.constant -1.000000e+30 : f32
    %28 = vector.broadcast %cst_27 : f32 to vector<16x16xf32>
    %29 = arith.select %2, %27, %28 : vector<16x16xi1>, vector<16x16xf32>
    %cst_28 = arith.constant dense<0xFF800000> : vector<16xf32>
    %30 = vector.multi_reduction <maximumf>, %29, %cst_28 [0] : vector<16x16xf32> to vector<16xf32>
    %31 = vector.shape_cast %30 : vector<16xf32> to vector<1x16xf32>
    %cst_29 = arith.constant dense<0.000000e+00> : vector<32x16xf32>
    %32 = tpu.matmul %26, %0, %cst_29 {dimension_numbers = #tpu.dot_dimension_numbers<[0], [0], [1], [1], [0, 1, 1, 1], [], []>} : vector<16x32xbf16>, vector<16x16xbf16>, vector<32x16xf32> -> vector<32x16xf32>
    %33 = arith.extf %24 : vector<32x16xbf16> to vector<32x16xf32>
    %34 = arith.mulf %33, %32 : vector<32x16xf32>
    %cst_30 = arith.constant dense<0.000000e+00> : vector<16xf32>
    %35 = vector.multi_reduction <add>, %34, %cst_30 [0] : vector<32x16xf32> to vector<16xf32>
    %36 = vector.shape_cast %35 : vector<16xf32> to vector<1x16xf32>
    %cst_31 = arith.constant 6.250000e-02 : f32
    %37 = vector.broadcast %cst_31 : f32 to vector<1x16xf32>
    %38 = arith.mulf %36, %37 : vector<1x16xf32>
    %39 = arith.subf %31, %38 : vector<1x16xf32>
    %c0_32 = arith.constant 0 : index
    %c1_33 = arith.constant 1 : index
    %c0_34 = arith.constant 0 : index
    %c0_35 = arith.constant 0 : index
    %40 = vector.load %arg5[%c0_32, %c1_33, %c0_34, %c0_35] : memref<1x4x1x16xf32, #tpu.memory_space<vmem>>, vector<1x1x1x16xf32>
    %41 = vector.shape_cast %40 : vector<1x1x1x16xf32> to vector<1x16xf32>
    %42 = vector.shape_cast %39 : vector<1x16xf32> to vector<1x1x1x16xf32>
    tpu.vector_store %arg5[%c0_32, %c1_33, %c0_34, %c0_35], %42 {strides = array<i32>} : memref<1x4x1x16xf32, #tpu.memory_space<vmem>>, vector<1x1x1x16xf32>,
    %c0_36 = arith.constant 0 : index
    %c2 = arith.constant 2 : index
    %c0_37 = arith.constant 0 : index
    %c0_38 = arith.constant 0 : index
    %43 = vector.load %arg2[%c0_36, %c2, %c0_37, %c0_38] : memref<1x4x32x16xbf16, #tpu.memory_space<vmem>>, vector<1x1x32x16xbf16>
    %44 = vector.shape_cast %43 : vector<1x1x32x16xbf16> to vector<32x16xbf16>
    %c0_39 = arith.constant 0 : index
    %c2_40 = arith.constant 2 : index
    %c0_41 = arith.constant 0 : index
    %c0_42 = arith.constant 0 : index
    %45 = vector.load %arg3[%c0_39, %c2_40, %c0_41, %c0_42] : memref<1x4x16x32xbf16, #tpu.memory_space<vmem>>, vector<1x1x16x32xbf16>
    %46 = vector.shape_cast %45 : vector<1x1x16x32xbf16> to vector<16x32xbf16>
    %cst_43 = arith.constant dense<0.000000e+00> : vector<16x16xf32>
    %47 = tpu.matmul %46, %44, %cst_43 {dimension_numbers = #tpu.dot_dimension_numbers<[1], [0], [0], [1], [0, 0, 1, 1], [], []>} : vector<16x32xbf16>, vector<32x16xbf16>, vector<16x16xf32> -> vector<16x16xf32>
    %cst_44 = arith.constant -1.000000e+30 : f32
    %48 = vector.broadcast %cst_44 : f32 to vector<16x16xf32>
    %49 = arith.select %2, %47, %48 : vector<16x16xi1>, vector<16x16xf32>
    %cst_45 = arith.constant dense<0xFF800000> : vector<16xf32>
    %50 = vector.multi_reduction <maximumf>, %49, %cst_45 [0] : vector<16x16xf32> to vector<16xf32>
    %51 = vector.shape_cast %50 : vector<16xf32> to vector<1x16xf32>
    %cst_46 = arith.constant dense<0.000000e+00> : vector<32x16xf32>
    %52 = tpu.matmul %46, %0, %cst_46 {dimension_numbers = #tpu.dot_dimension_numbers<[0], [0], [1], [1], [0, 1, 1, 1], [], []>} : vector<16x32xbf16>, vector<16x16xbf16>, vector<32x16xf32> -> vector<32x16xf32>
    %53 = arith.extf %44 : vector<32x16xbf16> to vector<32x16xf32>
    %54 = arith.mulf %53, %52 : vector<32x16xf32>
    %cst_47 = arith.constant dense<0.000000e+00> : vector<16xf32>
    %55 = vector.multi_reduction <add>, %54, %cst_47 [0] : vector<32x16xf32> to vector<16xf32>
    %56 = vector.shape_cast %55 : vector<16xf32> to vector<1x16xf32>
    %cst_48 = arith.constant 6.250000e-02 : f32
    %57 = vector.broadcast %cst_48 : f32 to vector<1x16xf32>
    %58 = arith.mulf %56, %57 : vector<1x16xf32>
    %59 = arith.subf %51, %58 : vector<1x16xf32>
    %c0_49 = arith.constant 0 : index
    %c2_50 = arith.constant 2 : index
    %c0_51 = arith.constant 0 : index
    %c0_52 = arith.constant 0 : index
    %60 = vector.load %arg5[%c0_49, %c2_50, %c0_51, %c0_52] : memref<1x4x1x16xf32, #tpu.memory_space<vmem>>, vector<1x1x1x16xf32>
    %61 = vector.shape_cast %60 : vector<1x1x1x16xf32> to vector<1x16xf32>
    %62 = vector.shape_cast %59 : vector<1x16xf32> to vector<1x1x1x16xf32>
    tpu.vector_store %arg5[%c0_49, %c2_50, %c0_51, %c0_52], %62 {strides = array<i32>} : memref<1x4x1x16xf32, #tpu.memory_space<vmem>>, vector<1x1x1x16xf32>,
    %c0_53 = arith.constant 0 : index
    %c3 = arith.constant 3 : index
    %c0_54 = arith.constant 0 : index
    %c0_55 = arith.constant 0 : index
    %63 = vector.load %arg2[%c0_53, %c3, %c0_54, %c0_55] : memref<1x4x32x16xbf16, #tpu.memory_space<vmem>>, vector<1x1x32x16xbf16>
    %64 = vector.shape_cast %63 : vector<1x1x32x16xbf16> to vector<32x16xbf16>
    %c0_56 = arith.constant 0 : index
    %c3_57 = arith.constant 3 : index
    %c0_58 = arith.constant 0 : index
    %c0_59 = arith.constant 0 : index
    %65 = vector.load %arg3[%c0_56, %c3_57, %c0_58, %c0_59] : memref<1x4x16x32xbf16, #tpu.memory_space<vmem>>, vector<1x1x16x32xbf16>
    %66 = vector.shape_cast %65 : vector<1x1x16x32xbf16> to vector<16x32xbf16>
    %cst_60 = arith.constant dense<0.000000e+00> : vector<16x16xf32>
    %67 = tpu.matmul %66, %64, %cst_60 {dimension_numbers = #tpu.dot_dimension_numbers<[1], [0], [0], [1], [0, 0, 1, 1], [], []>} : vector<16x32xbf16>, vector<32x16xbf16>, vector<16x16xf32> -> vector<16x16xf32>
    %cst_61 = arith.constant -1.000000e+30 : f32
    %68 = vector.broadcast %cst_61 : f32 to vector<16x16xf32>
    %69 = arith.select %2, %67, %68 : vector<16x16xi1>, vector<16x16xf32>
    %cst_62 = arith.constant dense<0xFF800000> : vector<16xf32>
    %70 = vector.multi_reduction <maximumf>, %69, %cst_62 [0] : vector<16x16xf32> to vector<16xf32>
    %71 = vector.shape_cast %70 : vector<16xf32> to vector<1x16xf32>
    %cst_63 = arith.constant dense<0.000000e+00> : vector<32x16xf32>
    %72 = tpu.matmul %66, %0, %cst_63 {dimension_numbers = #tpu.dot_dimension_numbers<[0], [0], [1], [1], [0, 1, 1, 1], [], []>} : vector<16x32xbf16>, vector<16x16xbf16>, vector<32x16xf32> -> vector<32x16xf32>
    %73 = arith.extf %64 : vector<32x16xbf16> to vector<32x16xf32>
    %74 = arith.mulf %73, %72 : vector<32x16xf32>
    %cst_64 = arith.constant dense<0.000000e+00> : vector<16xf32>
    %75 = vector.multi_reduction <add>, %74, %cst_64 [0] : vector<32x16xf32> to vector<16xf32>
    %76 = vector.shape_cast %75 : vector<16xf32> to vector<1x16xf32>
    %cst_65 = arith.constant 6.250000e-02 : f32
    %77 = vector.broadcast %cst_65 : f32 to vector<1x16xf32>
    %78 = arith.mulf %76, %77 : vector<1x16xf32>
    %79 = arith.subf %71, %78 : vector<1x16xf32>
    %c0_66 = arith.constant 0 : index
    %c3_67 = arith.constant 3 : index
    %c0_68 = arith.constant 0 : index
    %c0_69 = arith.constant 0 : index
    %80 = vector.load %arg5[%c0_66, %c3_67, %c0_68, %c0_69] : memref<1x4x1x16xf32, #tpu.memory_space<vmem>>, vector<1x1x1x16xf32>
    %81 = vector.shape_cast %80 : vector<1x1x1x16xf32> to vector<1x16xf32>
    %82 = vector.shape_cast %79 : vector<1x16xf32> to vector<1x1x1x16xf32>
    tpu.vector_store %arg5[%c0_66, %c3_67, %c0_68, %c0_69], %82 {strides = array<i32>} : memref<1x4x1x16xf32, #tpu.memory_space<vmem>>, vector<1x1x1x16xf32>,
    return
  }
  func.func @transform_0(%arg0: i32, %arg1: i32) -> (i32, i32, i32, i32) {
    %c0_i32 = arith.constant 0 : i32
    %c0_i32_0 = arith.constant 0 : i32
    %c0_i32_1 = arith.constant 0 : i32
    return %arg1, %c0_i32, %c0_i32_0, %arg0 : i32, i32, i32, i32
  }
  func.func @transform_1(%arg0: i32, %arg1: i32) -> (i32, i32, i32, i32) {
    %c0_i32 = arith.constant 0 : i32
    %c0_i32_0 = arith.constant 0 : i32
    %c0_i32_1 = arith.constant 0 : i32
    %c0_i32_2 = arith.constant 0 : i32
    return %arg1, %c0_i32, %c0_i32_0, %c0_i32_1 : i32, i32, i32, i32
  }
  func.func @transform_2(%arg0: i32, %arg1: i32) -> (i32, i32) {
    %c0_i32 = arith.constant 0 : i32
    %c0_i32_0 = arith.constant 0 : i32
    return %c0_i32, %arg0 : i32, i32
  }
  func.func @transform_3(%arg0: i32, %arg1: i32) -> (i32, i32, i32, i32) {
    %c0_i32 = arith.constant 0 : i32
    %c0_i32_0 = arith.constant 0 : i32
    %c0_i32_1 = arith.constant 0 : i32
    return %arg1, %c0_i32, %c0_i32_0, %arg0 : i32, i32, i32, i32
  }
}

</mosaic_0001>

<llo_original>
// kernel: tpu_custom_call.1
$region0: #{tpu_custom_call.1}
  #allocation0 [shape = 'u32[]', space=smem, size = 0x4, offset = 0x4, fixed_abs, tag = 'smem constant byte address 0x4 - core index']
  #allocation1 [shape = 'u32[144,128]{1,0:T(1,128)}', space=vmem, size = 0x12000, scoped, tag = 'internal scratch']
  %s0 = inlined_call_operand.vmem [shape: bf16[2,4,32,16], index: 0, kind: input, shape index: {}]
  %s1 = inlined_call_operand.vmem [shape: bf16[2,4,16,32], index: 1, kind: input, shape index: {}]
  %s2 = inlined_call_operand.vmem [shape: bf16[16,16], index: 2, kind: input, shape index: {}]
  %s3 = inlined_call_operand.hbm [shape: f32[2,4,1,16], index: 3, kind: output, shape index: {}]
  %s4 = sld [smem:[#allocation0]]
  $region45: #{tpu_custom_call.1} parent=0
    _
  %s6 = ssub.s32 1, %s4
  %s7 = scalar_select 0, %s6, %s4
  $region1: #{tpu_custom_call.1} parent=0
    #allocation2 [shape = 'u8[4096]{0}', space=vmem, size = 0x1000, scoped, tag = 'output window, operand 0']
    #allocation3 [shape = 's32[2]{0}', space=sflag, size = 0x8, scoped, tag = 'scoped memory for tpu_custom_call.1']
    %8 = vsyncpa [#allocation3], 0
    %s9 = scalar_lea.sflag [#allocation3], 1
    %10 = vsyncpa %s9, 0
    loop: start=0, step=1, limit=4
    $region2: #{tpu_custom_call.1} parent=1 // loop_pre_header
      _
    $region3: #{tpu_custom_call.1} parent=1 // loop_header
      %s12 = sphi 0, %s16
      %p13 = scmp.ge.s32.totalorder %s12, 4
      %s19 = sphi 0, %s31
      %s20 = sphi 0, %s27
      %s21 = sphi 0, %s19
      %s22 = sphi 0, %s20
      %s23 = sphi 0, %s21
      %s24 = sphi 0, %s22
      %s36 = sphi 0, %s38
      %s39 = sphi 0, %s36
      %s40 = sphi 0, %s39
      %s56 = sphi 0, %s40
      %s62 = sphi 0, %s64
      %s65 = sphi 0, %s62
      %s66 = sphi 0, %s65
      %s82 = sphi 0, %s66
      %s88 = sphi 0, %s90
      %s91 = sphi 0, %s88
      %s92 = sphi 0, %s91
      %s108 = sphi 0, %s92
      %s116 = sphi 0, %s118
      %s119 = sphi 0, %s116
      %s120 = sphi 0, %s119
      %s136 = sphi 0, %s120
    $region4: #{tpu_custom_call.1} parent=1 // loop_header_branch
      %15 = sbr.rel (%p13) target = $region8
    $region5: #{tpu_custom_call.1} parent=1 // loop_body
      %s17 = ssub.s32 %s12, 1
      %s18 = ssub.s32 %s12, 2
      %s25 = sadd.s32 1, %s20
      %p26 = scmp.ge.s32.totalorder %s25, 2
      %s27 = scalar_select %p26, 0, %s25
      %s28 = sadd.s32 1, %s19
      %s29 = scalar_select %p26, %s28, %s19
      %p30 = scmp.ge.s32.totalorder %s29, 1
      %s31 = scalar_select %p30, 0, %s29
      %s32 = ssub.s32 %s20, %s27
      %s33 = ssub.s32 %s19, %s31
      %s34 = sor.u32 %s32, %s33
      %p35 = scmp.eq.s32.totalorder %s34, 0
      %s37 = sadd.s32 %s36, 1
      %s38 = scalar_select %p35, %s36, %s37
      %p41 = pneg %p35
      %p42 = scmp.eq.s32.totalorder %s12, 1
      %p43 = por %p41, %p42
      %p44 = scmp.ne.s32.totalorder %s36, %s39
      %p45 = scmp.eq.s32.totalorder %s12, 0
      %p46 = por %p44, %p45
      %p47 = scmp.ne.s32.totalorder %s36, %s39
      %p48 = scmp.eq.s32.totalorder %s17, 1
      %p49 = por %p47, %p48
      %p50 = scmp.ne.s32.totalorder %s39, %s40
      %p51 = scmp.eq.s32.totalorder %s17, 0
      %p52 = por %p50, %p51
      %p53 = scmp.ne.s32.totalorder %s39, %s40
      %p54 = scmp.eq.s32.totalorder %s18, 1
      %p55 = por %p53, %p54
      %p57 = scmp.ne.s32.totalorder %s40, %s56
      %p58 = scmp.eq.s32.totalorder %s18, 0
      %p59 = por %p57, %p58
      %s60 = ssub.s32 %s20, %s27
      %p61 = scmp.eq.s32.totalorder %s60, 0
      %s63 = sadd.s32 %s62, 1
      %s64 = scalar_select %p61, %s62, %s63
      %p67 = pneg %p61
      %p68 = scmp.eq.s32.totalorder %s12, 1
      %p69 = por %p67, %p68
      %p70 = scmp.ne.s32.totalorder %s62, %s65
      %p71 = scmp.eq.s32.totalorder %s12, 0
      %p72 = por %p70, %p71
      %p73 = scmp.ne.s32.totalorder %s62, %s65
      %p74 = scmp.eq.s32.totalorder %s17, 1
      %p75 = por %p73, %p74
      %p76 = scmp.ne.s32.totalorder %s65, %s66
      %p77 = scmp.eq.s32.totalorder %s17, 0
      %p78 = por %p76, %p77
      %p79 = scmp.ne.s32.totalorder %s65, %s66
      %p80 = scmp.eq.s32.totalorder %s18, 1
      %p81 = por %p79, %p80
      %p83 = scmp.ne.s32.totalorder %s66, %s82
      %p84 = scmp.eq.s32.totalorder %s18, 0
      %p85 = por %p83, %p84
      %s86 = ssub.s32 %s19, %s31
      %p87 = scmp.eq.s32.totalorder %s86, 0
      %s89 = sadd.s32 %s88, 1
      %s90 = scalar_select %p87, %s88, %s89
      %p93 = pneg %p87
      %p94 = scmp.eq.s32.totalorder %s12, 1
      %p95 = por %p93, %p94
      %p96 = scmp.ne.s32.totalorder %s88, %s91
      %p97 = scmp.eq.s32.totalorder %s12, 0
      %p98 = por %p96, %p97
      %p99 = scmp.ne.s32.totalorder %s88, %s91
      %p100 = scmp.eq.s32.totalorder %s17, 1
      %p101 = por %p99, %p100
      %p102 = scmp.ne.s32.totalorder %s91, %s92
      %p103 = scmp.eq.s32.totalorder %s17, 0
      %p104 = por %p102, %p103
      %p105 = scmp.ne.s32.totalorder %s91, %s92
      %p106 = scmp.eq.s32.totalorder %s18, 1
      %p107 = por %p105, %p106
      %p109 = scmp.ne.s32.totalorder %s92, %s108
      %p110 = scmp.eq.s32.totalorder %s18, 0
      %p111 = por %p109, %p110
      %s112 = ssub.s32 %s20, %s27
      %s113 = ssub.s32 %s19, %s31
      %s114 = sor.u32 %s112, %s113
      %p115 = scmp.eq.s32.totalorder %s114, 0
      %s117 = sadd.s32 %s116, 1
      %s118 = scalar_select %p115, %s116, %s117
      %p121 = pneg %p115
      %p122 = scmp.eq.s32.totalorder %s12, 1
      %p123 = por %p121, %p122
      %p124 = scmp.ne.s32.totalorder %s116, %s119
      %p125 = scmp.eq.s32.totalorder %s12, 0
      %p126 = por %p124, %p125
      %p127 = scmp.ne.s32.totalorder %s116, %s119
      %p128 = scmp.eq.s32.totalorder %s17, 1
      %p129 = por %p127, %p128
      %p130 = scmp.ne.s32.totalorder %s119, %s120
      %p131 = scmp.eq.s32.totalorder %s17, 0
      %p132 = por %p130, %p131
      %p133 = scmp.ne.s32.totalorder %s119, %s120
      %p134 = scmp.eq.s32.totalorder %s18, 1
      %p135 = por %p133, %p134
      %p137 = scmp.ne.s32.totalorder %s120, %s136
      %p138 = scmp.eq.s32.totalorder %s18, 0
      %p139 = por %p137, %p138
      %p140 = scmp.le.s32.totalorder 1, %s12
      %p141 = scmp.lt.s32.totalorder %s12, 3
      %p142 = pnand %p140, %p141
      %p143 = pneg %p142
      // Predicated region
      $region9: #{tpu_custom_call.1} parent=5 // pred_check
        _
      $region10: #{tpu_custom_call.1} parent=5 // pred_check_branch
        %145 = sbr.rel (%p142) target = $region12
      $region11: #{tpu_custom_call.1} parent=5 // pred_region
        %s146 = ssub.s32 %s12, 1
        // Predicated region
        $region13: #{tpu_custom_call.1} parent=11 // pred_check
          %p147 = pneg %p104
        $region14: #{tpu_custom_call.1} parent=11 // pred_check_branch
          %149 = sbr.rel (%p147) target = $region16
        $region15: #{tpu_custom_call.1} parent=11 // pred_region
          %p150 = scmp.lt.s32.totalorder %s21, 0
          %s151 = scalar_select %p150, %s21, 0
          %s152 = smul.addr %s151, 4
          %s153 = scalar_lea.vmem %s2, %s152
        $region16: #{tpu_custom_call.1} parent=11 // pred_fallthru
          _
      $region12: #{tpu_custom_call.1} parent=5 // pred_fallthru
        _
      %p154 = scmp.lt.s32.totalorder %s12, 2
      // Predicated region
      $region17: #{tpu_custom_call.1} parent=5 // pred_check
        %p155 = pneg %p154
      $region18: #{tpu_custom_call.1} parent=5 // pred_check_branch
        %157 = sbr.rel (%p155) target = $region20
      $region19: #{tpu_custom_call.1} parent=5 // pred_region
        // Predicated region
        $region21: #{tpu_custom_call.1} parent=19 // pred_check
          %p158 = pneg %p46
        $region22: #{tpu_custom_call.1} parent=19 // pred_check_branch
          %160 = sbr.rel (%p158) target = $region24
        $region23: #{tpu_custom_call.1} parent=19 // pred_region
          %p161 = scmp.lt.s32.totalorder %s20, 1
          %s162 = scalar_select %p161, %s20, 1
          %p163 = scmp.lt.s32.totalorder %s19, 0
          %s164 = scalar_select %p163, %s19, 0
          %s165 = smul.addr %s162, 16
          %s166 = sadd.s32 %s164, %s165
          %s167 = smul.addr %s166, 4
          %s168 = scalar_lea.vmem %s0, %s167
        $region24: #{tpu_custom_call.1} parent=19 // pred_fallthru
          _
        // Predicated region
        $region25: #{tpu_custom_call.1} parent=19 // pred_check
          %p169 = pneg %p72
        $region26: #{tpu_custom_call.1} parent=19 // pred_check_branch
          %171 = sbr.rel (%p169) target = $region28
        $region27: #{tpu_custom_call.1} parent=19 // pred_region
          %p172 = scmp.lt.s32.totalorder %s20, 1
          %s173 = scalar_select %p172, %s20, 1
          %s174 = smul.addr %s173, 8
          %s175 = smul.addr %s174, 4
          %s176 = scalar_lea.vmem %s1, %s175
        $region28: #{tpu_custom_call.1} parent=19 // pred_fallthru
          _
      $region20: #{tpu_custom_call.1} parent=5 // pred_fallthru
        _
      %p177 = scmp.le.s32.totalorder 1, %s12
      %p178 = scmp.lt.s32.totalorder %s12, 3
      %p179 = pnand %p177, %p178
      %p180 = pneg %p179
      // Predicated region
      $region29: #{tpu_custom_call.1} parent=5 // pred_check
        _
      $region30: #{tpu_custom_call.1} parent=5 // pred_check_branch
        %182 = sbr.rel (%p179) target = $region32
      $region31: #{tpu_custom_call.1} parent=5 // pred_region
        %s183 = ssub.s32 %s12, 1
        %p184 = scmp.lt.s32.totalorder %s22, 1
        %s185 = scalar_select %p184, %s22, 1
        %p186 = scmp.lt.s32.totalorder %s21, 0
        %s187 = scalar_select %p186, %s21, 0
        %s188 = smul.addr %s185, 16
        %s189 = sadd.s32 %s187, %s188
        %s190 = smul.addr %s189, 4
        %s191 = scalar_lea.vmem %s0, %s190
        %p192 = pneg %p52
        %p193 = pneg %p49
        %p194 = scmp.lt.s32.totalorder %s22, 1
        %s195 = scalar_select %p194, %s22, 1
        %s196 = smul.addr %s195, 8
        %s197 = smul.addr %s196, 4
        %s198 = scalar_lea.vmem %s1, %s197
        %p199 = pneg %p78
        %p200 = pneg %p75
        %p201 = scmp.lt.s32.totalorder %s21, 0
        %s202 = scalar_select %p201, %s21, 0
        %s203 = smul.addr %s202, 4
        %s204 = scalar_lea.vmem %s2, %s203
        %p205 = pneg %p104
        %p206 = pneg %p101
        %p207 = pneg %p132
        %p208 = pneg %p129
        %s209 = sand.u32 %s119, 1
        %s210 = scalar_lea.sflag [#allocation3], %s209
        %s211 = sand.u32 %s119, 1
        %s212 = smul.addr %s211, 4
        %s213 = scalar_lea.vmem [#allocation2], %s212
        %p214 = scmp.lt.s32.totalorder %s22, 1
        %s215 = scalar_select %p214, %s22, 1
        %p216 = scmp.lt.s32.totalorder %s21, 0
        %s217 = scalar_select %p216, %s21, 0
        %s218 = smul.addr %s215, 16
        %s219 = sadd.s32 %s217, %s218
        %s220 = smul.addr %s219, 4
        %s221 = scalar_lea.vmem %s0, %s220
        %p222 = scmp.lt.s32.totalorder %s22, 1
        %s223 = scalar_select %p222, %s22, 1
        %s224 = smul.addr %s223, 8
        %s225 = smul.addr %s224, 4
        %s226 = scalar_lea.vmem %s1, %s225
        %p227 = scmp.lt.s32.totalorder %s21, 0
        %s228 = scalar_select %p227, %s21, 0
        %s229 = smul.addr %s228, 4
        %s230 = scalar_lea.vmem %s2, %s229
        %v234 = vld [vmem:[%s230] sm:$0xf]
        %v235 = vld [vmem:[%s230 + $0x4] sm:$0xf]
        %vm236 = vcmp.gt.bf16.partialorder %v234, 0
        %vm237 = vcmp.gt.bf16.partialorder %v235, 0
        %v238 = vld [vmem:[%s221] sm:$0xf]
        %v239 = vld [vmem:[%s221 + $0x4] sm:$0xf]
        %v240 = vld [vmem:[%s221 + $0x8] sm:$0xf]
        %v241 = vld [vmem:[%s221 + $0xc] sm:$0xf]
        %v242 = vld [vmem:[%s226] sm:$0xf]
        %v243 = vld [vmem:[%s226 + $0x4] sm:$0xf]
        %v246 = vunpack.c.l.b16 %v242
        %v247 = vunpack.c.l.b16 %v243
        %v248 = vpack.c.b16 %v247, %v246
        %v253 = vunpack.c.l.b16 %v238
        %v254 = vunpack.c.l.b16 %v239
        %v255 = vunpack.c.l.b16 %v240
        %v256 = vunpack.c.l.b16 %v241
        %v257 = vpack.c.b16 %v254, %v253
        %v258 = vpack.c.b16 %v256, %v255
        %vm261 = vcmask 261120
        %v263 = vsel %vm261, %v248, 0
        %265 = vmatprep.subr.bf16.mxu0 0
        %266 = vmatpush1.bf16.msra.mxu0 %v257
        %267 = vmatprep.subr.bf16.mxu0 0
        %268 = vmatpush1.bf16.msra.mxu0 %v258
        %269 = vmatprep.subr.bf16.mxu0 0
        %270 = vmatpush1.bf16.msra.mxu0 0
        %271 = vmatprep.subr.bf16.mxu0 0
        %272 = vmatpush1.bf16.msra.mxu0 0
        %273 = vmatprep.subr.bf16.mxu0 0
        %274 = vmatpush1.bf16.msra.mxu0 0
        %275 = vmatprep.subr.bf16.mxu0 0
        %276 = vmatpush1.bf16.msra.mxu0 0
        %277 = vmatprep.subr.bf16.mxu0 0
        %278 = vmatpush1.bf16.msra.mxu0 0
        %279 = vmatprep.subr.bf16.mxu0 0
        %280 = vmatpush1.bf16.msra.mxu0 0
        %281 = vmatprep.subr.bf16.mxu0 0
        %282 = vmatpush1.bf16.msra.mxu0 0
        %283 = vmatprep.subr.bf16.mxu0 0
        %284 = vmatpush1.bf16.msra.mxu0 0
        %285 = vmatprep.subr.bf16.mxu0 0
        %286 = vmatpush1.bf16.msra.mxu0 0
        %287 = vmatprep.subr.bf16.mxu0 0
        %288 = vmatpush1.bf16.msra.mxu0 0
        %289 = vmatprep.subr.bf16.mxu0 0
        %290 = vmatpush1.bf16.msra.mxu0 0
        %291 = vmatprep.subr.bf16.mxu0 0
        %292 = vmatpush1.bf16.msra.mxu0 0
        %293 = vmatprep.subr.bf16.mxu0 0
        %294 = vmatpush1.bf16.msra.mxu0 0
        %295 = vmatprep.subr.bf16.mxu0 0
        %296 = vmatpush1.bf16.msra.mxu0 0
        %297 = vmatprep.mubr.bf16.mxu0 0
        %298 = vmatmul.mubr.bf16.gmra.mrb[0].mxu0 %v263
        %v299 = vpop.f32.mrb[0].mxu0
        %v300 = vadd.f32 0.0, %v299
        %v301 = vpop.f32.mrb[0].mxu0
        %v302 = vpop.f32.mrb[0].mxu0
        %v303 = vadd.f32 0.0, %v302
        %v304 = vpop.f32.mrb[0].mxu0
        %305 = vdwg.mxu0
        %v306 = vsel %vm236, 65537, 0
        %v307 = vsel %vm237, 65537, 0
        %v308 = vunpack.c.l.b16 %v306
        %v309 = vunpack.c.l.b16 %v307
        %vm310 = vcmp.ne.s32.totalorder %v308, 0
        %vm311 = vcmp.ne.s32.totalorder %v309, 0
        %v312 = vsel %vm310, %v300, -1e+30
        %v313 = vsel %vm311, %v303, -1e+30
        %vm314 = vcmask 130048
        %v315 = vsel %vm314, %v312, -inf
        %v316 = vsel %vm314, %v313, -inf
        %v317 = vmax.f32 %v315, %v316
        %v318 = vrot.slane %v317, 4
        %v319 = vmax.f32 %v317, %v318
        %v320 = vrot.slane %v319, 2
        %v321 = vmax.f32 %v319, %v320
        %v322 = vrot.slane %v321, 1
        %v323 = vmax.f32 %v321, %v322
        %325 = vxpose.xlu0.c.b16.start [1/8] %v248, 128
        %326 = vxpose.xlu0.c.b16.cont [2/8] 0, 128
        %327 = vxpose.xlu0.c.b16.cont [3/8] 0, 128
        %328 = vxpose.xlu0.c.b16.cont [4/8] 0, 128
        %329 = vxpose.xlu0.c.b16.cont [5/8] 0, 128
        %330 = vxpose.xlu0.c.b16.cont [6/8] 0, 128
        %331 = vxpose.xlu0.c.b16.cont [7/8] 0, 128
        %332 = vxpose.xlu0.c.b16.end [8/8] 0, 128
        %v333 = vpop.trf.xlu0
        %v334 = vpop.trf.xlu0
        %v335 = vpop.trf.xlu0
        %v336 = vpop.trf.xlu0
        %v337 = vpop.trf.xlu0
        %v338 = vpop.trf.xlu0
        %v339 = vpop.trf.xlu0
        %v340 = vpop.trf.xlu0
        %v343 = vunpack.c.l.b16 %v234
        %v344 = vunpack.c.l.b16 %v235
        %v345 = vpack.c.b16 %v344, %v343
        %v348 = vsel %vm314, %v333, 0
        %v351 = vsel %vm314, %v334, 0
        %353 = vmatprep.subr.bf16.mxu0 0
        %354 = vmatpush1.bf16.msra.mxu0 %v345
        %355 = vmatprep.subr.bf16.mxu0 0
        %356 = vmatpush1.bf16.msra.mxu0 0
        %357 = vmatprep.subr.bf16.mxu0 0
        %358 = vmatpush1.bf16.msra.mxu0 0
        %359 = vmatprep.subr.bf16.mxu0 0
        %360 = vmatpush1.bf16.msra.mxu0 0
        %361 = vmatprep.subr.bf16.mxu0 0
        %362 = vmatpush1.bf16.msra.mxu0 0
        %363 = vmatprep.subr.bf16.mxu0 0
        %364 = vmatpush1.bf16.msra.mxu0 0
        %365 = vmatprep.subr.bf16.mxu0 0
        %366 = vmatpush1.bf16.msra.mxu0 0
        %367 = vmatprep.subr.bf16.mxu0 0
        %368 = vmatpush1.bf16.msra.mxu0 0
        %369 = vmatprep.subr.bf16.mxu0 0
        %370 = vmatpush1.bf16.msra.mxu0 0
        %371 = vmatprep.subr.bf16.mxu0 0
        %372 = vmatpush1.bf16.msra.mxu0 0
        %373 = vmatprep.subr.bf16.mxu0 0
        %374 = vmatpush1.bf16.msra.mxu0 0
        %375 = vmatprep.subr.bf16.mxu0 0
        %376 = vmatpush1.bf16.msra.mxu0 0
        %377 = vmatprep.subr.bf16.mxu0 0
        %378 = vmatpush1.bf16.msra.mxu0 0
        %379 = vmatprep.subr.bf16.mxu0 0
        %380 = vmatpush1.bf16.msra.mxu0 0
        %381 = vmatprep.subr.bf16.mxu0 0
        %382 = vmatpush1.bf16.msra.mxu0 0
        %383 = vmatprep.subr.bf16.mxu0 0
        %384 = vmatpush1.bf16.msra.mxu0 0
        %385 = vmatprep.mubr.bf16.mxu0 0
        %386 = vmatmul.mubr.bf16.gmra.mrb[0].mxu0 %v348
        %v387 = vpop.f32.mrb[0].mxu0
        %v388 = vadd.f32 0.0, %v387
        %v389 = vpop.f32.mrb[0].mxu0
        %v390 = vpop.f32.mrb[0].mxu0
        %v391 = vadd.f32 0.0, %v390
        %v392 = vpop.f32.mrb[0].mxu0
        %393 = vmatprep.mubr.bf16.mxu0 0
        %394 = vmatmul.mubr.bf16.gmra.mrb[0].mxu0 %v351
        %v395 = vpop.f32.mrb[0].mxu0
        %v396 = vadd.f32 0.0, %v395
        %v397 = vpop.f32.mrb[0].mxu0
        %v398 = vpop.f32.mrb[0].mxu0
        %v399 = vadd.f32 0.0, %v398
        %v400 = vpop.f32.mrb[0].mxu0
        %401 = vdwg.mxu0
        %v402 = vunpack.c.l.bf16 %v238
        %v403 = vunpack.c.l.bf16 %v239
        %v404 = vunpack.c.l.bf16 %v240
        %v405 = vunpack.c.l.bf16 %v241
        %v406 = vmul.f32 %v402, %v388
        %v407 = vmul.f32 %v403, %v391
        %v408 = vmul.f32 %v404, %v396
        %v409 = vmul.f32 %v405, %v399
        %v410 = vsel %vm314, %v406, 0.0
        %v411 = vsel %vm314, %v407, 0.0
        %v412 = vadd.f32 %v410, %v411
        %v413 = vsel %vm314, %v408, 0.0
        %v414 = vadd.f32 %v412, %v413
        %v415 = vsel %vm314, %v409, 0.0
        %v416 = vadd.f32 %v414, %v415
        %v417 = vrot.slane %v416, 4
        %v418 = vadd.f32 %v416, %v417
        %v419 = vrot.slane %v418, 2
        %v420 = vadd.f32 %v418, %v419
        %v421 = vrot.slane %v420, 1
        %v422 = vadd.f32 %v420, %v421
        %v423 = vmul.f32 %v422, 0.0625
        %v424 = vsub.f32 %v323, %v423
        %vm425 = vcmask 122880
        %426 = vst.msk [vmem:[%s213] sm:$0x1] %vm425, %v424
        %s427 = scalar_lea.vmem %s221, 16
        %v428 = vld [vmem:[%s427] sm:$0xf]
        %v429 = vld [vmem:[%s427 + $0x4] sm:$0xf]
        %v430 = vld [vmem:[%s427 + $0x8] sm:$0xf]
        %v431 = vld [vmem:[%s427 + $0xc] sm:$0xf]
        %s432 = scalar_lea.vmem %s226, 8
        %v433 = vld [vmem:[%s432] sm:$0xf]
        %v434 = vld [vmem:[%s432 + $0x4] sm:$0xf]
        %v437 = vunpack.c.l.b16 %v433
        %v438 = vunpack.c.l.b16 %v434
        %v439 = vpack.c.b16 %v438, %v437
        %v444 = vunpack.c.l.b16 %v428
        %v445 = vunpack.c.l.b16 %v429
        %v446 = vunpack.c.l.b16 %v430
        %v447 = vunpack.c.l.b16 %v431
        %v448 = vpack.c.b16 %v445, %v444
        %v449 = vpack.c.b16 %v447, %v446
        %v453 = vsel %vm261, %v439, 0
        %455 = vmatprep.subr.bf16.mxu0 0
        %456 = vmatpush1.bf16.msra.mxu0 %v448
        %457 = vmatprep.subr.bf16.mxu0 0
        %458 = vmatpush1.bf16.msra.mxu0 %v449
        %459 = vmatprep.subr.bf16.mxu0 0
        %460 = vmatpush1.bf16.msra.mxu0 0
        %461 = vmatprep.subr.bf16.mxu0 0
        %462 = vmatpush1.bf16.msra.mxu0 0
        %463 = vmatprep.subr.bf16.mxu0 0
        %464 = vmatpush1.bf16.msra.mxu0 0
        %465 = vmatprep.subr.bf16.mxu0 0
        %466 = vmatpush1.bf16.msra.mxu0 0
        %467 = vmatprep.subr.bf16.mxu0 0
        %468 = vmatpush1.bf16.msra.mxu0 0
        %469 = vmatprep.subr.bf16.mxu0 0
        %470 = vmatpush1.bf16.msra.mxu0 0
        %471 = vmatprep.subr.bf16.mxu0 0
        %472 = vmatpush1.bf16.msra.mxu0 0
        %473 = vmatprep.subr.bf16.mxu0 0
        %474 = vmatpush1.bf16.msra.mxu0 0
        %475 = vmatprep.subr.bf16.mxu0 0
        %476 = vmatpush1.bf16.msra.mxu0 0
        %477 = vmatprep.subr.bf16.mxu0 0
        %478 = vmatpush1.bf16.msra.mxu0 0
        %479 = vmatprep.subr.bf16.mxu0 0
        %480 = vmatpush1.bf16.msra.mxu0 0
        %481 = vmatprep.subr.bf16.mxu0 0
        %482 = vmatpush1.bf16.msra.mxu0 0
        %483 = vmatprep.subr.bf16.mxu0 0
        %484 = vmatpush1.bf16.msra.mxu0 0
        %485 = vmatprep.subr.bf16.mxu0 0
        %486 = vmatpush1.bf16.msra.mxu0 0
        %487 = vmatprep.mubr.bf16.mxu0 0
        %488 = vmatmul.mubr.bf16.gmra.mrb[0].mxu0 %v453
        %v489 = vpop.f32.mrb[0].mxu0
        %v490 = vadd.f32 0.0, %v489
        %v491 = vpop.f32.mrb[0].mxu0
        %v492 = vpop.f32.mrb[0].mxu0
        %v493 = vadd.f32 0.0, %v492
        %v494 = vpop.f32.mrb[0].mxu0
        %495 = vdwg.mxu0
        %v496 = vsel %vm310, %v490, -1e+30
        %v497 = vsel %vm311, %v493, -1e+30
        %v498 = vsel %vm314, %v496, -inf
        %v499 = vsel %vm314, %v497, -inf
        %v500 = vmax.f32 %v498, %v499
        %v501 = vrot.slane %v500, 4
        %v502 = vmax.f32 %v500, %v501
        %v503 = vrot.slane %v502, 2
        %v504 = vmax.f32 %v502, %v503
        %v505 = vrot.slane %v504, 1
        %v506 = vmax.f32 %v504, %v505
        %508 = vxpose.xlu0.c.b16.start [1/8] %v439, 128
        %509 = vxpose.xlu0.c.b16.cont [2/8] 0, 128
        %510 = vxpose.xlu0.c.b16.cont [3/8] 0, 128
        %511 = vxpose.xlu0.c.b16.cont [4/8] 0, 128
        %512 = vxpose.xlu0.c.b16.cont [5/8] 0, 128
        %513 = vxpose.xlu0.c.b16.cont [6/8] 0, 128
        %514 = vxpose.xlu0.c.b16.cont [7/8] 0, 128
        %515 = vxpose.xlu0.c.b16.end [8/8] 0, 128
        %v516 = vpop.trf.xlu0
        %v517 = vpop.trf.xlu0
        %v518 = vpop.trf.xlu0
        %v519 = vpop.trf.xlu0
        %v520 = vpop.trf.xlu0
        %v521 = vpop.trf.xlu0
        %v522 = vpop.trf.xlu0
        %v523 = vpop.trf.xlu0
        %v525 = vsel %vm314, %v516, 0
        %v528 = vsel %vm314, %v517, 0
        %530 = vmatprep.subr.bf16.mxu0 0
        %531 = vmatpush1.bf16.msra.mxu0 %v345
        %532 = vmatprep.subr.bf16.mxu0 0
        %533 = vmatpush1.bf16.msra.mxu0 0
        %534 = vmatprep.subr.bf16.mxu0 0
        %535 = vmatpush1.bf16.msra.mxu0 0
        %536 = vmatprep.subr.bf16.mxu0 0
        %537 = vmatpush1.bf16.msra.mxu0 0
        %538 = vmatprep.subr.bf16.mxu0 0
        %539 = vmatpush1.bf16.msra.mxu0 0
        %540 = vmatprep.subr.bf16.mxu0 0
        %541 = vmatpush1.bf16.msra.mxu0 0
        %542 = vmatprep.subr.bf16.mxu0 0
        %543 = vmatpush1.bf16.msra.mxu0 0
        %544 = vmatprep.subr.bf16.mxu0 0
        %545 = vmatpush1.bf16.msra.mxu0 0
        %546 = vmatprep.subr.bf16.mxu0 0
        %547 = vmatpush1.bf16.msra.mxu0 0
        %548 = vmatprep.subr.bf16.mxu0 0
        %549 = vmatpush1.bf16.msra.mxu0 0
        %550 = vmatprep.subr.bf16.mxu0 0
        %551 = vmatpush1.bf16.msra.mxu0 0
        %552 = vmatprep.subr.bf16.mxu0 0
        %553 = vmatpush1.bf16.msra.mxu0 0
        %554 = vmatprep.subr.bf16.mxu0 0
        %555 = vmatpush1.bf16.msra.mxu0 0
        %556 = vmatprep.subr.bf16.mxu0 0
        %557 = vmatpush1.bf16.msra.mxu0 0
        %558 = vmatprep.subr.bf16.mxu0 0
        %559 = vmatpush1.bf16.msra.mxu0 0
        %560 = vmatprep.subr.bf16.mxu0 0
        %561 = vmatpush1.bf16.msra.mxu0 0
        %562 = vmatprep.mubr.bf16.mxu0 0
        %563 = vmatmul.mubr.bf16.gmra.mrb[0].mxu0 %v525
        %v564 = vpop.f32.mrb[0].mxu0
        %v565 = vadd.f32 0.0, %v564
        %v566 = vpop.f32.mrb[0].mxu0
        %v567 = vpop.f32.mrb[0].mxu0
        %v568 = vadd.f32 0.0, %v567
        %v569 = vpop.f32.mrb[0].mxu0
        %570 = vmatprep.mubr.bf16.mxu0 0
        %571 = vmatmul.mubr.bf16.gmra.mrb[0].mxu0 %v528
        %v572 = vpop.f32.mrb[0].mxu0
        %v573 = vadd.f32 0.0, %v572
        %v574 = vpop.f32.mrb[0].mxu0
        %v575 = vpop.f32.mrb[0].mxu0
        %v576 = vadd.f32 0.0, %v575
        %v577 = vpop.f32.mrb[0].mxu0
        %578 = vdwg.mxu0
        %v579 = vunpack.c.l.bf16 %v428
        %v580 = vunpack.c.l.bf16 %v429
        %v581 = vunpack.c.l.bf16 %v430
        %v582 = vunpack.c.l.bf16 %v431
        %v583 = vmul.f32 %v579, %v565
        %v584 = vmul.f32 %v580, %v568
        %v585 = vmul.f32 %v581, %v573
        %v586 = vmul.f32 %v582, %v576
        %v587 = vsel %vm314, %v583, 0.0
        %v588 = vsel %vm314, %v584, 0.0
        %v589 = vadd.f32 %v587, %v588
        %v590 = vsel %vm314, %v585, 0.0
        %v591 = vadd.f32 %v589, %v590
        %v592 = vsel %vm314, %v586, 0.0
        %v593 = vadd.f32 %v591, %v592
        %v594 = vrot.slane %v593, 4
        %v595 = vadd.f32 %v593, %v594
        %v596 = vrot.slane %v595, 2
        %v597 = vadd.f32 %v595, %v596
        %v598 = vrot.slane %v597, 1
        %v599 = vadd.f32 %v597, %v598
        %v600 = vmul.f32 %v599, 0.0625
        %v601 = vsub.f32 %v506, %v600
        %s602 = scalar_lea.vmem %s213, 1 [#allocation2]
        %603 = vst.msk [vmem:[%s602] sm:$0x1] %vm425, %v601
        %s604 = scalar_lea.vmem %s221, 32
        %v605 = vld [vmem:[%s604] sm:$0xf]
        %v606 = vld [vmem:[%s604 + $0x4] sm:$0xf]
        %v607 = vld [vmem:[%s604 + $0x8] sm:$0xf]
        %v608 = vld [vmem:[%s604 + $0xc] sm:$0xf]
        %s609 = scalar_lea.vmem %s226, 16
        %v610 = vld [vmem:[%s609] sm:$0xf]
        %v611 = vld [vmem:[%s609 + $0x4] sm:$0xf]
        %v614 = vunpack.c.l.b16 %v610
        %v615 = vunpack.c.l.b16 %v611
        %v616 = vpack.c.b16 %v615, %v614
        %v621 = vunpack.c.l.b16 %v605
        %v622 = vunpack.c.l.b16 %v606
        %v623 = vunpack.c.l.b16 %v607
        %v624 = vunpack.c.l.b16 %v608
        %v625 = vpack.c.b16 %v622, %v621
        %v626 = vpack.c.b16 %v624, %v623
        %v630 = vsel %vm261, %v616, 0
        %632 = vmatprep.subr.bf16.mxu0 0
        %633 = vmatpush1.bf16.msra.mxu0 %v625
        %634 = vmatprep.subr.bf16.mxu0 0
        %635 = vmatpush1.bf16.msra.mxu0 %v626
        %636 = vmatprep.subr.bf16.mxu0 0
        %637 = vmatpush1.bf16.msra.mxu0 0
        %638 = vmatprep.subr.bf16.mxu0 0
        %639 = vmatpush1.bf16.msra.mxu0 0
        %640 = vmatprep.subr.bf16.mxu0 0
        %641 = vmatpush1.bf16.msra.mxu0 0
        %642 = vmatprep.subr.bf16.mxu0 0
        %643 = vmatpush1.bf16.msra.mxu0 0
        %644 = vmatprep.subr.bf16.mxu0 0
        %645 = vmatpush1.bf16.msra.mxu0 0
        %646 = vmatprep.subr.bf16.mxu0 0
        %647 = vmatpush1.bf16.msra.mxu0 0
        %648 = vmatprep.subr.bf16.mxu0 0
        %649 = vmatpush1.bf16.msra.mxu0 0
        %650 = vmatprep.subr.bf16.mxu0 0
        %651 = vmatpush1.bf16.msra.mxu0 0
        %652 = vmatprep.subr.bf16.mxu0 0
        %653 = vmatpush1.bf16.msra.mxu0 0
        %654 = vmatprep.subr.bf16.mxu0 0
        %655 = vmatpush1.bf16.msra.mxu0 0
        %656 = vmatprep.subr.bf16.mxu0 0
        %657 = vmatpush1.bf16.msra.mxu0 0
        %658 = vmatprep.subr.bf16.mxu0 0
        %659 = vmatpush1.bf16.msra.mxu0 0
        %660 = vmatprep.subr.bf16.mxu0 0
        %661 = vmatpush1.bf16.msra.mxu0 0
        %662 = vmatprep.subr.bf16.mxu0 0
        %663 = vmatpush1.bf16.msra.mxu0 0
        %664 = vmatprep.mubr.bf16.mxu0 0
        %665 = vmatmul.mubr.bf16.gmra.mrb[0].mxu0 %v630
        %v666 = vpop.f32.mrb[0].mxu0
        %v667 = vadd.f32 0.0, %v666
        %v668 = vpop.f32.mrb[0].mxu0
        %v669 = vpop.f32.mrb[0].mxu0
        %v670 = vadd.f32 0.0, %v669
        %v671 = vpop.f32.mrb[0].mxu0
        %672 = vdwg.mxu0
        %v673 = vsel %vm310, %v667, -1e+30
        %v674 = vsel %vm311, %v670, -1e+30
        %v675 = vsel %vm314, %v673, -inf
        %v676 = vsel %vm314, %v674, -inf
        %v677 = vmax.f32 %v675, %v676
        %v678 = vrot.slane %v677, 4
        %v679 = vmax.f32 %v677, %v678
        %v680 = vrot.slane %v679, 2
        %v681 = vmax.f32 %v679, %v680
        %v682 = vrot.slane %v681, 1
        %v683 = vmax.f32 %v681, %v682
        %685 = vxpose.xlu0.c.b16.start [1/8] %v616, 128
        %686 = vxpose.xlu0.c.b16.cont [2/8] 0, 128
        %687 = vxpose.xlu0.c.b16.cont [3/8] 0, 128
        %688 = vxpose.xlu0.c.b16.cont [4/8] 0, 128
        %689 = vxpose.xlu0.c.b16.cont [5/8] 0, 128
        %690 = vxpose.xlu0.c.b16.cont [6/8] 0, 128
        %691 = vxpose.xlu0.c.b16.cont [7/8] 0, 128
        %692 = vxpose.xlu0.c.b16.end [8/8] 0, 128
        %v693 = vpop.trf.xlu0
        %v694 = vpop.trf.xlu0
        %v695 = vpop.trf.xlu0
        %v696 = vpop.trf.xlu0
        %v697 = vpop.trf.xlu0
        %v698 = vpop.trf.xlu0
        %v699 = vpop.trf.xlu0
        %v700 = vpop.trf.xlu0
        %v702 = vsel %vm314, %v693, 0
        %v705 = vsel %vm314, %v694, 0
        %707 = vmatprep.subr.bf16.mxu0 0
        %708 = vmatpush1.bf16.msra.mxu0 %v345
        %709 = vmatprep.subr.bf16.mxu0 0
        %710 = vmatpush1.bf16.msra.mxu0 0
        %711 = vmatprep.subr.bf16.mxu0 0
        %712 = vmatpush1.bf16.msra.mxu0 0
        %713 = vmatprep.subr.bf16.mxu0 0
        %714 = vmatpush1.bf16.msra.mxu0 0
        %715 = vmatprep.subr.bf16.mxu0 0
        %716 = vmatpush1.bf16.msra.mxu0 0
        %717 = vmatprep.subr.bf16.mxu0 0
        %718 = vmatpush1.bf16.msra.mxu0 0
        %719 = vmatprep.subr.bf16.mxu0 0
        %720 = vmatpush1.bf16.msra.mxu0 0
        %721 = vmatprep.subr.bf16.mxu0 0
        %722 = vmatpush1.bf16.msra.mxu0 0
        %723 = vmatprep.subr.bf16.mxu0 0
        %724 = vmatpush1.bf16.msra.mxu0 0
        %725 = vmatprep.subr.bf16.mxu0 0
        %726 = vmatpush1.bf16.msra.mxu0 0
        %727 = vmatprep.subr.bf16.mxu0 0
        %728 = vmatpush1.bf16.msra.mxu0 0
        %729 = vmatprep.subr.bf16.mxu0 0
        %730 = vmatpush1.bf16.msra.mxu0 0
        %731 = vmatprep.subr.bf16.mxu0 0
        %732 = vmatpush1.bf16.msra.mxu0 0
        %733 = vmatprep.subr.bf16.mxu0 0
        %734 = vmatpush1.bf16.msra.mxu0 0
        %735 = vmatprep.subr.bf16.mxu0 0
        %736 = vmatpush1.bf16.msra.mxu0 0
        %737 = vmatprep.subr.bf16.mxu0 0
        %738 = vmatpush1.bf16.msra.mxu0 0
        %739 = vmatprep.mubr.bf16.mxu0 0
        %740 = vmatmul.mubr.bf16.gmra.mrb[0].mxu0 %v702
        %v741 = vpop.f32.mrb[0].mxu0
        %v742 = vadd.f32 0.0, %v741
        %v743 = vpop.f32.mrb[0].mxu0
        %v744 = vpop.f32.mrb[0].mxu0
        %v745 = vadd.f32 0.0, %v744
        %v746 = vpop.f32.mrb[0].mxu0
        %747 = vmatprep.mubr.bf16.mxu0 0
        %748 = vmatmul.mubr.bf16.gmra.mrb[0].mxu0 %v705
        %v749 = vpop.f32.mrb[0].mxu0
        %v750 = vadd.f32 0.0, %v749
        %v751 = vpop.f32.mrb[0].mxu0
        %v752 = vpop.f32.mrb[0].mxu0
        %v753 = vadd.f32 0.0, %v752
        %v754 = vpop.f32.mrb[0].mxu0
        %755 = vdwg.mxu0
        %v756 = vunpack.c.l.bf16 %v605
        %v757 = vunpack.c.l.bf16 %v606
        %v758 = vunpack.c.l.bf16 %v607
        %v759 = vunpack.c.l.bf16 %v608
        %v760 = vmul.f32 %v756, %v742
        %v761 = vmul.f32 %v757, %v745
        %v762 = vmul.f32 %v758, %v750
        %v763 = vmul.f32 %v759, %v753
        %v764 = vsel %vm314, %v760, 0.0
        %v765 = vsel %vm314, %v761, 0.0
        %v766 = vadd.f32 %v764, %v765
        %v767 = vsel %vm314, %v762, 0.0
        %v768 = vadd.f32 %v766, %v767
        %v769 = vsel %vm314, %v763, 0.0
        %v770 = vadd.f32 %v768, %v769
        %v771 = vrot.slane %v770, 4
        %v772 = vadd.f32 %v770, %v771
        %v773 = vrot.slane %v772, 2
        %v774 = vadd.f32 %v772, %v773
        %v775 = vrot.slane %v774, 1
        %v776 = vadd.f32 %v774, %v775
        %v777 = vmul.f32 %v776, 0.0625
        %v778 = vsub.f32 %v683, %v777
        %s779 = scalar_lea.vmem %s213, 2 [#allocation2]
        %780 = vst.msk [vmem:[%s779] sm:$0x1] %vm425, %v778
        %s781 = scalar_lea.vmem %s221, 48
        %v782 = vld [vmem:[%s781] sm:$0xf]
        %v783 = vld [vmem:[%s781 + $0x4] sm:$0xf]
        %v784 = vld [vmem:[%s781 + $0x8] sm:$0xf]
        %v785 = vld [vmem:[%s781 + $0xc] sm:$0xf]
        %s786 = scalar_lea.vmem %s226, 24
        %v787 = vld [vmem:[%s786] sm:$0xf]
        %v788 = vld [vmem:[%s786 + $0x4] sm:$0xf]
        %v791 = vunpack.c.l.b16 %v787
        %v792 = vunpack.c.l.b16 %v788
        %v793 = vpack.c.b16 %v792, %v791
        %v798 = vunpack.c.l.b16 %v782
        %v799 = vunpack.c.l.b16 %v783
        %v800 = vunpack.c.l.b16 %v784
        %v801 = vunpack.c.l.b16 %v785
        %v802 = vpack.c.b16 %v799, %v798
        %v803 = vpack.c.b16 %v801, %v800
        %v807 = vsel %vm261, %v793, 0
        %809 = vmatprep.subr.bf16.mxu0 0
        %810 = vmatpush1.bf16.msra.mxu0 %v802
        %811 = vmatprep.subr.bf16.mxu0 0
        %812 = vmatpush1.bf16.msra.mxu0 %v803
        %813 = vmatprep.subr.bf16.mxu0 0
        %814 = vmatpush1.bf16.msra.mxu0 0
        %815 = vmatprep.subr.bf16.mxu0 0
        %816 = vmatpush1.bf16.msra.mxu0 0
        %817 = vmatprep.subr.bf16.mxu0 0
        %818 = vmatpush1.bf16.msra.mxu0 0
        %819 = vmatprep.subr.bf16.mxu0 0
        %820 = vmatpush1.bf16.msra.mxu0 0
        %821 = vmatprep.subr.bf16.mxu0 0
        %822 = vmatpush1.bf16.msra.mxu0 0
        %823 = vmatprep.subr.bf16.mxu0 0
        %824 = vmatpush1.bf16.msra.mxu0 0
        %825 = vmatprep.subr.bf16.mxu0 0
        %826 = vmatpush1.bf16.msra.mxu0 0
        %827 = vmatprep.subr.bf16.mxu0 0
        %828 = vmatpush1.bf16.msra.mxu0 0
        %829 = vmatprep.subr.bf16.mxu0 0
        %830 = vmatpush1.bf16.msra.mxu0 0
        %831 = vmatprep.subr.bf16.mxu0 0
        %832 = vmatpush1.bf16.msra.mxu0 0
        %833 = vmatprep.subr.bf16.mxu0 0
        %834 = vmatpush1.bf16.msra.mxu0 0
        %835 = vmatprep.subr.bf16.mxu0 0
        %836 = vmatpush1.bf16.msra.mxu0 0
        %837 = vmatprep.subr.bf16.mxu0 0
        %838 = vmatpush1.bf16.msra.mxu0 0
        %839 = vmatprep.subr.bf16.mxu0 0
        %840 = vmatpush1.bf16.msra.mxu0 0
        %841 = vmatprep.mubr.bf16.mxu0 0
        %842 = vmatmul.mubr.bf16.gmra.mrb[0].mxu0 %v807
        %v843 = vpop.f32.mrb[0].mxu0
        %v844 = vadd.f32 0.0, %v843
        %v845 = vpop.f32.mrb[0].mxu0
        %v846 = vpop.f32.mrb[0].mxu0
        %v847 = vadd.f32 0.0, %v846
        %v848 = vpop.f32.mrb[0].mxu0
        %849 = vdwg.mxu0
        %v850 = vsel %vm310, %v844, -1e+30
        %v851 = vsel %vm311, %v847, -1e+30
        %v852 = vsel %vm314, %v850, -inf
        %v853 = vsel %vm314, %v851, -inf
        %v854 = vmax.f32 %v852, %v853
        %v855 = vrot.slane %v854, 4
        %v856 = vmax.f32 %v854, %v855
        %v857 = vrot.slane %v856, 2
        %v858 = vmax.f32 %v856, %v857
        %v859 = vrot.slane %v858, 1
        %v860 = vmax.f32 %v858, %v859
        %862 = vxpose.xlu0.c.b16.start [1/8] %v793, 128
        %863 = vxpose.xlu0.c.b16.cont [2/8] 0, 128
        %864 = vxpose.xlu0.c.b16.cont [3/8] 0, 128
        %865 = vxpose.xlu0.c.b16.cont [4/8] 0, 128
        %866 = vxpose.xlu0.c.b16.cont [5/8] 0, 128
        %867 = vxpose.xlu0.c.b16.cont [6/8] 0, 128
        %868 = vxpose.xlu0.c.b16.cont [7/8] 0, 128
        %869 = vxpose.xlu0.c.b16.end [8/8] 0, 128
        %v870 = vpop.trf.xlu0
        %v871 = vpop.trf.xlu0
        %v872 = vpop.trf.xlu0
        %v873 = vpop.trf.xlu0
        %v874 = vpop.trf.xlu0
        %v875 = vpop.trf.xlu0
        %v876 = vpop.trf.xlu0
        %v877 = vpop.trf.xlu0
        %v879 = vsel %vm314, %v870, 0
        %v882 = vsel %vm314, %v871, 0
        %884 = vmatprep.subr.bf16.mxu0 0
        %885 = vmatpush1.bf16.msra.mxu0 %v345
        %886 = vmatprep.subr.bf16.mxu0 0
        %887 = vmatpush1.bf16.msra.mxu0 0
        %888 = vmatprep.subr.bf16.mxu0 0
        %889 = vmatpush1.bf16.msra.mxu0 0
        %890 = vmatprep.subr.bf16.mxu0 0
        %891 = vmatpush1.bf16.msra.mxu0 0
        %892 = vmatprep.subr.bf16.mxu0 0
        %893 = vmatpush1.bf16.msra.mxu0 0
        %894 = vmatprep.subr.bf16.mxu0 0
        %895 = vmatpush1.bf16.msra.mxu0 0
        %896 = vmatprep.subr.bf16.mxu0 0
        %897 = vmatpush1.bf16.msra.mxu0 0
        %898 = vmatprep.subr.bf16.mxu0 0
        %899 = vmatpush1.bf16.msra.mxu0 0
        %900 = vmatprep.subr.bf16.mxu0 0
        %901 = vmatpush1.bf16.msra.mxu0 0
        %902 = vmatprep.subr.bf16.mxu0 0
        %903 = vmatpush1.bf16.msra.mxu0 0
        %904 = vmatprep.subr.bf16.mxu0 0
        %905 = vmatpush1.bf16.msra.mxu0 0
        %906 = vmatprep.subr.bf16.mxu0 0
        %907 = vmatpush1.bf16.msra.mxu0 0
        %908 = vmatprep.subr.bf16.mxu0 0
        %909 = vmatpush1.bf16.msra.mxu0 0
        %910 = vmatprep.subr.bf16.mxu0 0
        %911 = vmatpush1.bf16.msra.mxu0 0
        %912 = vmatprep.subr.bf16.mxu0 0
        %913 = vmatpush1.bf16.msra.mxu0 0
        %914 = vmatprep.subr.bf16.mxu0 0
        %915 = vmatpush1.bf16.msra.mxu0 0
        %916 = vmatprep.mubr.bf16.mxu0 0
        %917 = vmatmul.mubr.bf16.gmra.mrb[0].mxu0 %v879
        %v918 = vpop.f32.mrb[0].mxu0
        %v919 = vadd.f32 0.0, %v918
        %v920 = vpop.f32.mrb[0].mxu0
        %v921 = vpop.f32.mrb[0].mxu0
        %v922 = vadd.f32 0.0, %v921
        %v923 = vpop.f32.mrb[0].mxu0
        %924 = vmatprep.mubr.bf16.mxu0 0
        %925 = vmatmul.mubr.bf16.gmra.mrb[0].mxu0 %v882
        %v926 = vpop.f32.mrb[0].mxu0
        %v927 = vadd.f32 0.0, %v926
        %v928 = vpop.f32.mrb[0].mxu0
        %v929 = vpop.f32.mrb[0].mxu0
        %v930 = vadd.f32 0.0, %v929
        %v931 = vpop.f32.mrb[0].mxu0
        %932 = vdwg.mxu0
        %v933 = vunpack.c.l.bf16 %v782
        %v934 = vunpack.c.l.bf16 %v783
        %v935 = vunpack.c.l.bf16 %v784
        %v936 = vunpack.c.l.bf16 %v785
        %v937 = vmul.f32 %v933, %v919
        %v938 = vmul.f32 %v934, %v922
        %v939 = vmul.f32 %v935, %v927
        %v940 = vmul.f32 %v936, %v930
        %v941 = vsel %vm314, %v937, 0.0
        %v942 = vsel %vm314, %v938, 0.0
        %v943 = vadd.f32 %v941, %v942
        %v944 = vsel %vm314, %v939, 0.0
        %v945 = vadd.f32 %v943, %v944
        %v946 = vsel %vm314, %v940, 0.0
        %v947 = vadd.f32 %v945, %v946
        %v948 = vrot.slane %v947, 4
        %v949 = vadd.f32 %v947, %v948
        %v950 = vrot.slane %v949, 2
        %v951 = vadd.f32 %v949, %v950
        %v952 = vrot.slane %v951, 1
        %v953 = vadd.f32 %v951, %v952
        %v954 = vmul.f32 %v953, 0.0625
        %v955 = vsub.f32 %v860, %v954
        %s956 = scalar_lea.vmem %s213, 3 [#allocation2]
        %957 = vst.msk [vmem:[%s956] sm:$0x1] %vm425, %v955
        %s958 = sand.u32 %s119, 1
        %s959 = scalar_lea.sflag [#allocation3], %s958
        %s960 = sand.u32 %s119, 1
        %s961 = smul.addr %s960, 4
        %s962 = scalar_lea.vmem [#allocation2], %s961
        // Predicated region
        $region33: #{tpu_custom_call.1} parent=31 // pred_check
          %p963 = pneg %p129
        $region34: #{tpu_custom_call.1} parent=31 // pred_check_branch
          %965 = sbr.rel (%p963) target = $region36
        $region35: #{tpu_custom_call.1} parent=31 // pred_region
          %s967 = ssub.s32 64, 64
          %968 = vsyncadd %s959, %s967
          %s969 = smul.addr %s22, 4
          %s970 = sadd.s32 %s21, %s969
          %s971 = smul.addr %s970, 16
          %s972 = scalar_lea.hbm %s3, %s971
          %s973 = sshll.u32 %s962, 4
          %s974 = int_to_ptr.vmem [resolvable:$true] %s973
          %979 = dma.vmem_to_hbm [thread:$0]  %s974, 64, %s972, %s959, 16, 16, 1
        $region36: #{tpu_custom_call.1} parent=31 // pred_fallthru
          _
      $region32: #{tpu_custom_call.1} parent=5 // pred_fallthru
        _
      %p980 = scmp.le.s32.totalorder 2, %s12
      // Predicated region
      $region37: #{tpu_custom_call.1} parent=5 // pred_check
        %p981 = pneg %p980
      $region38: #{tpu_custom_call.1} parent=5 // pred_check_branch
        %983 = sbr.rel (%p981) target = $region40
      $region39: #{tpu_custom_call.1} parent=5 // pred_region
        %s984 = ssub.s32 %s12, 2
        // Predicated region
        $region41: #{tpu_custom_call.1} parent=39 // pred_check
          %p985 = pneg %p135
        $region42: #{tpu_custom_call.1} parent=39 // pred_check_branch
          %987 = sbr.rel (%p985) target = $region44
        $region43: #{tpu_custom_call.1} parent=39 // pred_region
          %s988 = sand.u32 %s120, 1
          %s989 = scalar_lea.sflag [#allocation3], %s988
          %s990 = sand.u32 %s120, 1
          %s991 = smul.addr %s990, 4
          %s992 = scalar_lea.vmem [#allocation2], %s991
          %993 = dma.done %s989, 64
        $region44: #{tpu_custom_call.1} parent=39 // pred_fallthru
          _
      $region40: #{tpu_custom_call.1} parent=5 // pred_fallthru
        _
    $region6: #{tpu_custom_call.1} parent=1 // loop_footer
      %s16 = sadd.s32 1, %s12
    $region7: #{tpu_custom_call.1} parent=1 // loop_footer_branch
      %11 = sbr.rel target = $region3
    $region8: #{tpu_custom_call.1} parent=1 // loop_exit
      _
    %994 = vsyncpa [#allocation3], 1
    %s995 = scalar_lea.sflag [#allocation3], 1
    %996 = vsyncpa %s995, 1

</llo_original>
